<compile_context>
chip_gen: v7x
topology: tpu7x:2x2x1
jax: 0.10.0
libtpu: 0.0.40
codegen_flags: <defaults>
</compile_context>

<pallas_src>
import jax
import jax.numpy as jnp
from jax.experimental import pallas as pl
from jax.experimental.pallas import tpu as pltpu


def _sinusoidal_iota_kernel(inv_freq_ref, scale_ref, out_ref):
    # inv_freq_ref: (1, half_dim) f32 VMEM
    # scale_ref:    (1,)          f32 SMEM
    # out_ref:      (tile_seq, dim) VMEM
    tile_seq = out_ref.shape[0]
    half = inv_freq_ref.shape[1]

    base = pl.program_id(0) * tile_seq                         # int32 scalar
    rows_i = base + jax.lax.broadcasted_iota(jnp.int32, (tile_seq, half), 0)
    rows = rows_i.astype(jnp.float32)                          # (tile, half)

    emb = rows * inv_freq_ref[...]                             # per-lane VPU mul
    scale = scale_ref[0]

    out_ref[:, :half] = (jnp.sin(emb) * scale).astype(out_ref.dtype)
    out_ref[:, half:] = (jnp.cos(emb) * scale).astype(out_ref.dtype)


def _sinusoidal_pos_kernel(pos_ref, inv_freq_ref, scale_ref, out_ref):
    # pos_ref:      (tile_seq, 1) f32 VMEM  (explicit positions path)
    # inv_freq_ref: (1, half_dim) f32 VMEM
    # scale_ref:    (1,)          f32 SMEM
    # out_ref:      (tile_seq, dim) VMEM
    half = inv_freq_ref.shape[1]
    emb = pos_ref[...] * inv_freq_ref[...]                     # (tile, half)
    scale = scale_ref[0]
    out_ref[:, :half] = (jnp.sin(emb) * scale).astype(out_ref.dtype)
    out_ref[:, half:] = (jnp.cos(emb) * scale).astype(out_ref.dtype)


def _default_tile_seq(seq_len, dim, out_bytes_per_elem,
                      vmem_budget_bytes=16 * 1024 * 1024):
    """Pick a seq tile so 2x double-buffered (tile, dim) output fits the budget.

    Budget is conservative enough for v7x's 64 MiB VMEM / 32 MiB default
    scoped limit; on v5e/v6e it simply leaves headroom.
    """
    bytes_per_row = max(1, dim * out_bytes_per_elem)
    tile = vmem_budget_bytes // (2 * bytes_per_row)
    tile = max(8, min(tile, seq_len, 4096))
    if tile < seq_len:
        tile -= tile % 8                 # keep sublane-aligned interior tiles
    return max(tile, 1)


def scaled_sinusoidal_embedding(x, scale, inv_freq, pos=None, *,
                                tile_seq=None, out_dtype=jnp.float32):
    """Pallas equivalent of ScaledSinusoidalEmbedding.forward.

    x:        (batch, seq, ...) — only x.shape[1] (seq_len) is used.
    scale:    (1,) learned scalar parameter.
    inv_freq: (half_dim,) buffer.
    pos:      optional (seq,) positions; defaults to arange(seq_len).
    Returns:  (seq, dim) embedding table (dim = 2 * half_dim).
    """
    seq_len = x.shape[1]
    half_dim = inv_freq.shape[0]
    dim = 2 * half_dim

    if tile_seq is None:
        tile_seq = _default_tile_seq(seq_len, dim, jnp.dtype(out_dtype).itemsize)
    tile_seq = min(tile_seq, seq_len)
    grid = (pl.cdiv(seq_len, tile_seq),)

    inv_freq2d = inv_freq.astype(jnp.float32).reshape(1, half_dim)
    scale1 = scale.astype(jnp.float32).reshape(1)

    out_spec = pl.BlockSpec((tile_seq, dim), lambda i: (i, 0))
    inv_spec = pl.BlockSpec((1, half_dim), lambda i: (0, 0))
    scale_spec = pl.BlockSpec(memory_space=pltpu.MemorySpace.SMEM)
    cparams = pltpu.CompilerParams(dimension_semantics=("parallel",))
    out_shape = jax.ShapeDtypeStruct((seq_len, dim), out_dtype)

    if pos is None:
        return pl.pallas_call(
            _sinusoidal_iota_kernel,
            out_shape=out_shape,
            grid=grid,
            in_specs=[inv_spec, scale_spec],
            out_specs=out_spec,
            compiler_params=cparams,
        )(inv_freq2d, scale1)

    pos2d = pos.astype(jnp.float32).reshape(seq_len, 1)
    pos_spec = pl.BlockSpec((tile_seq, 1), lambda i: (i, 0))
    return pl.pallas_call(
        _sinusoidal_pos_kernel,
        out_shape=out_shape,
        grid=grid,
        in_specs=[pos_spec, inv_spec, scale_spec],
        out_specs=out_spec,
        compiler_params=cparams,
    )(pos2d, inv_freq2d, scale1)


if __name__ == "__main__":
    # Small shapes consistent with the module (demo only; for realistic
    # shapes the seq-tiled grid kicks in automatically).
    dim = 32
    theta = 10000.0
    batch, seq_len = 2, 8

    # Deterministic parameter/buffer init, exactly as in __init__:
    #   scale = ones(1) * dim ** -0.5
    #   inv_freq = theta ** (-arange(half_dim)/half_dim)
    half_dim = dim // 2
    scale = jnp.ones((1,), dtype=jnp.float32) * (dim ** -0.5)
    freq_seq = jnp.arange(half_dim, dtype=jnp.float32) / half_dim
    inv_freq = theta ** (-freq_seq)

    # Example input (only its seq axis matters for the forward).
    key = jax.random.PRNGKey(0)
    x = jax.random.normal(key, (batch, seq_len, dim), dtype=jnp.float32)

    # Default-pos path (in-kernel iota).
    out = scaled_sinusoidal_embedding(x, scale, inv_freq)
    out = jax.block_until_ready(out)

    # Explicit-pos path (tiled pos input).
    pos_in = jnp.arange(seq_len, dtype=jnp.float32)
    out_pos = scaled_sinusoidal_embedding(x, scale, inv_freq, pos=pos_in)
    out_pos = jax.block_until_ready(out_pos)

    # Pure-JAX reference check.
    pos_ref = jnp.arange(seq_len, dtype=jnp.float32)
    emb_ref = pos_ref[:, None] * inv_freq[None, :]
    ref = jnp.concatenate([jnp.sin(emb_ref), jnp.cos(emb_ref)], axis=-1) * scale

    assert out.shape == (seq_len, dim)
    assert out.dtype == jnp.float32
    assert jnp.allclose(out, ref, atol=1e-5, rtol=1e-5)
    assert jnp.allclose(out_pos, ref, atol=1e-5, rtol=1e-5)

    print("KERNEL_OK")
</pallas_src>

<mosaic_0001>
module attributes {stable_mosaic.version = 11 : i64} {
  func.func @_sinusoidal_iota_kernel(%arg0: i32, %arg1: memref<1x16xf32, #tpu.memory_space<vmem>>, %arg2: memref<1xf32, #tpu.memory_space<smem>>, %arg3: memref<8x32xf32, #tpu.memory_space<vmem>>) attributes {dimension_semantics = [#tpu.dimension_semantics<parallel>], iteration_bounds = array<i64: 1>, scalar_prefetch = 0 : i64, scratch_operands = 0 : i64, tpu.core_type = #tpu.core_type<tc>, window_params = [{pipeline_mode = #tpu.pipeline_mode<synchronous>, transform_indices = @transform_0, window_bounds = array<i64: 1, 16>}, {transform_indices = @transform_1, window_bounds = array<i64: 1>}, {transform_indices = @transform_2, window_bounds = array<i64: 8, 32>}]} {
    %c8_i32 = arith.constant 8 : i32
    %0 = arith.muli %arg0, %c8_i32 : i32
    %1 = tpu.iota {dimensions = array<i32: 0>} : vector<8x16xi32>
    %2 = vector.broadcast %0 : i32 to vector<8x16xi32>
    %3 = arith.addi %2, %1 : vector<8x16xi32>
    %4 = arith.sitofp %3 : vector<8x16xi32> to vector<8x16xf32>
    %c0 = arith.constant 0 : index
    %c0_0 = arith.constant 0 : index
    %5 = vector.load %arg1[%c0, %c0_0] : memref<1x16xf32, #tpu.memory_space<vmem>>, vector<1x16xf32>
    %6 = vector.broadcast %5 : vector<1x16xf32> to vector<8x16xf32>
    %7 = arith.mulf %4, %6 : vector<8x16xf32>
    %c0_1 = arith.constant 0 : index
    %8 = memref.load %arg2[%c0_1] : memref<1xf32, #tpu.memory_space<smem>>
    %9 = math.sin %7 : vector<8x16xf32>
    %10 = vector.broadcast %8 : f32 to vector<8x16xf32>
    %11 = arith.mulf %9, %10 : vector<8x16xf32>
    %c0_2 = arith.constant 0 : index
    %c0_3 = arith.constant 0 : index
    %12 = vector.load %arg3[%c0_2, %c0_3] : memref<8x32xf32, #tpu.memory_space<vmem>>, vector<8x16xf32>
    tpu.vector_store %arg3[%c0_2, %c0_3], %11 {strides = array<i32>} : memref<8x32xf32, #tpu.memory_space<vmem>>, vector<8x16xf32>,
    %13 = math.cos %7 : vector<8x16xf32>
    %14 = vector.broadcast %8 : f32 to vector<8x16xf32>
    %15 = arith.mulf %13, %14 : vector<8x16xf32>
    %c0_4 = arith.constant 0 : index
    %c16 = arith.constant 16 : index
    %16 = vector.load %arg3[%c0_4, %c16] : memref<8x32xf32, #tpu.memory_space<vmem>>, vector<8x16xf32>
    tpu.vector_store %arg3[%c0_4, %c16], %15 {strides = array<i32>} : memref<8x32xf32, #tpu.memory_space<vmem>>, vector<8x16xf32>,
    return
  }
  func.func @transform_0(%arg0: i32) -> (i32, i32) {
    %c0_i32 = arith.constant 0 : i32
    %c0_i32_0 = arith.constant 0 : i32
    %c0_i32_1 = arith.constant 0 : i32
    return %c0_i32, %c0_i32_0 : i32, i32
  }
  func.func @transform_1(%arg0: i32) -> i32 {
    %c0_i32 = arith.constant 0 : i32
    %c0_i32_0 = arith.constant 0 : i32
    return %c0_i32 : i32
  }
  func.func @transform_2(%arg0: i32) -> (i32, i32) {
    %c0_i32 = arith.constant 0 : i32
    %c0_i32_0 = arith.constant 0 : i32
    return %arg0, %c0_i32 : i32, i32
  }
}

</mosaic_0001>

<llo_original>
// kernel: tpu_custom_call.1
$region0: #{tpu_custom_call.1}
  #allocation0 [shape = 'u32[]', space=smem, size = 0x4, offset = 0x4, fixed_abs, tag = 'smem constant byte address 0x4 - core index']
  #allocation1 [shape = 'u32[144,128]{1,0:T(1,128)}', space=vmem, size = 0x12000, scoped, tag = 'internal scratch']
  #allocation2 [shape = 'f32[1]{0:T(128)S(6)}', space=smem, size = 0x200, scoped, tag = 'scoped memory for tpu_custom_call.1']
  %s0 = inlined_call_operand.vmem [shape: f32[1,16], index: 0, kind: input, shape index: {}]
  %s1 = inlined_call_operand.<no memory space> [shape: f32[1], index: 1, kind: input, shape index: {}]
  %s2 = inlined_call_operand.hbm [shape: f32[8,32], index: 2, kind: output, shape index: {}]
  %s3 = sld [smem:[#allocation0]]
  $region18: #{tpu_custom_call.1} parent=0
    _
  %s5 = ssub.s32 1, %s3
  %s6 = scalar_select 0, %s5, %s3
  %7 = sst [smem:[#allocation2]] %s1
  $region1: #{tpu_custom_call.1} parent=0
    #allocation3 [shape = 'u8[4096]{0}', space=vmem, size = 0x1000, scoped, tag = 'output window, operand 0, single buffered']
    #allocation4 [shape = 's32[1]{0}', space=sflag, size = 0x4, scoped, tag = 'scoped memory for tpu_custom_call.1']
    %8 = vsyncpa [#allocation4], 0
    // Predicated region
    $region2: #{tpu_custom_call.1} parent=1 // pred_check
      _
    $region3: #{tpu_custom_call.1} parent=1 // pred_check_branch
      %10 = sbr.rel (0) target = $region5
    $region4: #{tpu_custom_call.1} parent=1 // pred_region
      _
    $region5: #{tpu_custom_call.1} parent=1 // pred_fallthru
      _
    // Predicated region
    $region6: #{tpu_custom_call.1} parent=1 // pred_check
      _
    $region7: #{tpu_custom_call.1} parent=1 // pred_check_branch
      %12 = sbr.rel (0) target = $region9
    $region8: #{tpu_custom_call.1} parent=1 // pred_region
      _
    $region9: #{tpu_custom_call.1} parent=1 // pred_fallthru
      _
    %s13 = smul.u32 0, 8
    %v14 = vlaneseq
    %v15 = vshrl.u32 %v14, 7
    %v16 = vstv %s13
    %v17 = vadd.s32 %v16, %v15
    %v18 = vcvt.s32.f32 %v17
    %v19 = vld [vmem:[%s0] sm:$0x1]
    %v21 = vlaneseq
    %v22 = vshrl.u32 %v21, 7
    %v23 = vsub.s32 0, %v22
    %v24 = vrot.slane %v19, %v23
    %v26 = vmul.f32 %v18, %v24
    %s27 = sld [smem:[#allocation2]]
    %v28 = vand.u32 2147483647, %v26
    %vm29 = vcmp.le.f32.partialorder %v28, 0.7853982
    %vm30 = vcmp.lt.s32.totalorder %v26, 0
    %v31 = vand.u32 %v26, 2139095040
    %v32 = vshrl.u32 %v31, 23
    %v33 = vsub.s32 %v32, 127
    %v34 = vand.u32 2147483647, %v26
    %v35 = vand.u32 %v34, 8388607
    %v36 = vor.u32 %v35, 8388608
    %v37 = vsub.s32 0, %v36
    %v38 = vadd.s32 %v33, 1
    %vm39 = vcmp.gt.s32.totalorder %v38, 0
    %v40 = vsel %vm39, %v38, 0
    %v41 = vshrl.u32 %v40, 5
    %v42 = vand.u32 %v40, 31
    %v43 = vsub.s32 32, %v42
    %v44 = vshrl.u32 683565275, %v43
    %v45 = vshll.u32 683565275, %v42
    %v46 = vshrl.u32 2475754826, %v43
    %v47 = vor.u32 %v45, %v46
    %v48 = vshll.u32 2475754826, %v42
    %v49 = vshrl.u32 2131351028, %v43
    %v50 = vor.u32 %v48, %v49
    %v51 = vshll.u32 2131351028, %v42
    %v52 = vshrl.u32 2102212464, %v43
    %v53 = vor.u32 %v51, %v52
    %v54 = vshll.u32 2102212464, %v42
    %v55 = vshrl.u32 920167782, %v43
    %v56 = vor.u32 %v54, %v55
    %v57 = vshll.u32 920167782, %v42
    %v58 = vshrl.u32 1326507024, %v43
    %v59 = vor.u32 %v57, %v58
    %vm60 = vcmp.lt.s32.totalorder %v41, 1
    %vm61 = vcmp.lt.s32.totalorder %v41, 2
    %vm62 = vcmp.lt.s32.totalorder %v41, 3
    %vm63 = vcmp.lt.s32.totalorder %v41, 4
    %v64 = vsel %vm60, %v44, %v47
    %v65 = vsel %vm63, %v53, 2102212464
    %v66 = vsel %vm62, %v50, %v65
    %v67 = vsel %vm61, %v64, %v66
    %v68 = vsel %vm60, %v47, %v50
    %v69 = vsel %vm63, %v56, 920167782
    %v70 = vsel %vm62, %v53, %v69
    %v71 = vsel %vm61, %v68, %v70
    %v72 = vsel %vm60, %v50, %v53
    %v73 = vsel %vm63, %v59, 1326507024
    %v74 = vsel %vm62, %v56, %v73
    %v75 = vsel %vm61, %v72, %v74
    %v76 = vshll.u32 %v36, 8
    %v77 = vmul.u32.u64.compose %v76, %v75
    %v78 = vextract.low.u32 %v77
    %v79 = vextract.high.u32 %v77
    %v80 = vmul.u32.u64.compose %v76, %v71
    %v81 = vextract.low.u32 %v80
    %v82 = vextract.high.u32 %v80
    %v83 = vmul.u32 %v76, %v67
    %v84 = vadd.s32 %v79, %v81
    %vm85 = vc.u32 %v79, %v81
    %v86 = vadd.s32 %v82, 1
    %v87 = vsel %vm85, %v86, %v82
    %v88 = vadd.s32 %v83, %v87
    %v89 = vadd.s32 %v88, 536870912
    %v90 = vshrl.u32 %v89, 30
    %v91 = vshll.u32 %v90, 30
    %v92 = vsub.s32 %v88, %v91
    %vm93 = vcmp.lt.s32.totalorder %v92, 0
    %v94 = vsub.s32 0, %v92
    %v95 = vsel %vm93, %v94, %v92
    %v96 = vclz %v95
    %v97 = vsub.s32 %v96, 2
    %vm98 = vcmp.gt.s32.totalorder 0, %v97
    %v99 = vsel %vm98, 0, %v97
    %v100 = vsub.s32 32, %v99
    %v101 = vshll.u32 %v92, %v99
    %v102 = vshrl.u32 %v84, %v100
    %v103 = vor.u32 %v101, %v102
    %v104 = vsub.s32 4294967266, %v99
    %v105 = vadd.s32 %v104, 127
    %v106 = vshll.u32 %v105, 23
    %v107 = vor.u32 4788187, %v106
    %v108 = vand.u32 2147483647, %v107
    %v110 = vcvt.s32.f32 %v103
    %v111 = vmul.f32 %v110, %v108
    %v112 = vxor.u32 %v111, 2147483648
    %v113 = vsel %vm30, %v112, %v111
    %v114 = vsub.s32 4, %v90
    %v115 = vsel %vm30, %v114, %v90
    %v116 = vsel %vm29, %v26, %v113
    %v117 = vsel %vm29, 0, %v115
    %v118 = vcosq.f32.pop %v116
    %v119 = vsinq.f32.pop %v116
    %vm120 = vweird.f32 %v26
    %v121 = vadd.s32 %v117, 3
    %v122 = vand.u32 %v121, 3
    %vm123 = vcmp.lt.s32.totalorder %v122, 2
    %vm124 = vcmp.eq.s32.totalorder %v122, 0
    %v125 = vxor.u32 %v119, 2147483648
    %v126 = vsel %vm124, %v118, %v125
    %vm127 = vcmp.eq.s32.totalorder %v122, 2
    %v128 = vxor.u32 %v118, 2147483648
    %v129 = vsel %vm127, %v128, %v119
    %v130 = vsel %vm123, %v126, %v129
    %v131 = vsel %vm120, nan, %v130
    %v132 = vstv %s27
    %v133 = vmul.f32 %v131, %v132
    %vm134 = vcmask 130048
    %135 = vst.msk [vmem:[#allocation3] sm:$0xff] %vm134, %v133
    %v136 = vand.u32 2147483647, %v26
    %vm137 = vcmp.le.f32.partialorder %v136, 0.7853982
    %vm138 = vcmp.lt.s32.totalorder %v26, 0
    %v139 = vand.u32 %v26, 2139095040
    %v140 = vshrl.u32 %v139, 23
    %v141 = vsub.s32 %v140, 127
    %v142 = vand.u32 2147483647, %v26
    %v143 = vand.u32 %v142, 8388607
    %v144 = vor.u32 %v143, 8388608
    %v145 = vsub.s32 0, %v144
    %v146 = vadd.s32 %v141, 1
    %vm147 = vcmp.gt.s32.totalorder %v146, 0
    %v148 = vsel %vm147, %v146, 0
    %v149 = vshrl.u32 %v148, 5
    %v150 = vand.u32 %v148, 31
    %v151 = vsub.s32 32, %v150
    %v152 = vshrl.u32 683565275, %v151
    %v153 = vshll.u32 683565275, %v150
    %v154 = vshrl.u32 2475754826, %v151
    %v155 = vor.u32 %v153, %v154
    %v156 = vshll.u32 2475754826, %v150
    %v157 = vshrl.u32 2131351028, %v151
    %v158 = vor.u32 %v156, %v157
    %v159 = vshll.u32 2131351028, %v150
    %v160 = vshrl.u32 2102212464, %v151
    %v161 = vor.u32 %v159, %v160
    %v162 = vshll.u32 2102212464, %v150
    %v163 = vshrl.u32 920167782, %v151
    %v164 = vor.u32 %v162, %v163
    %v165 = vshll.u32 920167782, %v150
    %v166 = vshrl.u32 1326507024, %v151
    %v167 = vor.u32 %v165, %v166
    %vm168 = vcmp.lt.s32.totalorder %v149, 1
    %vm169 = vcmp.lt.s32.totalorder %v149, 2
    %vm170 = vcmp.lt.s32.totalorder %v149, 3
    %vm171 = vcmp.lt.s32.totalorder %v149, 4
    %v172 = vsel %vm168, %v152, %v155
    %v173 = vsel %vm171, %v161, 2102212464
    %v174 = vsel %vm170, %v158, %v173
    %v175 = vsel %vm169, %v172, %v174
    %v176 = vsel %vm168, %v155, %v158
    %v177 = vsel %vm171, %v164, 920167782
    %v178 = vsel %vm170, %v161, %v177
    %v179 = vsel %vm169, %v176, %v178
    %v180 = vsel %vm168, %v158, %v161
    %v181 = vsel %vm171, %v167, 1326507024
    %v182 = vsel %vm170, %v164, %v181
    %v183 = vsel %vm169, %v180, %v182
    %v184 = vshll.u32 %v144, 8
    %v185 = vmul.u32.u64.compose %v184, %v183
    %v186 = vextract.low.u32 %v185
    %v187 = vextract.high.u32 %v185
    %v188 = vmul.u32.u64.compose %v184, %v179
    %v189 = vextract.low.u32 %v188
    %v190 = vextract.high.u32 %v188
    %v191 = vmul.u32 %v184, %v175
    %v192 = vadd.s32 %v187, %v189
    %vm193 = vc.u32 %v187, %v189
    %v194 = vadd.s32 %v190, 1
    %v195 = vsel %vm193, %v194, %v190
    %v196 = vadd.s32 %v191, %v195
    %v197 = vadd.s32 %v196, 536870912
    %v198 = vshrl.u32 %v197, 30
    %v199 = vshll.u32 %v198, 30
    %v200 = vsub.s32 %v196, %v199
    %vm201 = vcmp.lt.s32.totalorder %v200, 0
    %v202 = vsub.s32 0, %v200
    %v203 = vsel %vm201, %v202, %v200
    %v204 = vclz %v203
    %v205 = vsub.s32 %v204, 2
    %vm206 = vcmp.gt.s32.totalorder 0, %v205
    %v207 = vsel %vm206, 0, %v205
    %v208 = vsub.s32 32, %v207
    %v209 = vshll.u32 %v200, %v207
    %v210 = vshrl.u32 %v192, %v208
    %v211 = vor.u32 %v209, %v210
    %v212 = vsub.s32 4294967266, %v207
    %v213 = vadd.s32 %v212, 127
    %v214 = vshll.u32 %v213, 23
    %v215 = vor.u32 4788187, %v214
    %v216 = vand.u32 2147483647, %v215
    %v218 = vcvt.s32.f32 %v211
    %v219 = vmul.f32 %v218, %v216
    %v220 = vxor.u32 %v219, 2147483648
    %v221 = vsel %vm138, %v220, %v219
    %v222 = vsub.s32 4, %v198
    %v223 = vsel %vm138, %v222, %v198
    %v224 = vsel %vm137, %v26, %v221
    %v225 = vsel %vm137, 0, %v223
    %v226 = vcosq.f32.pop %v224
    %v227 = vsinq.f32.pop %v224
    %vm228 = vweird.f32 %v26
    %v229 = vand.u32 %v225, 3
    %vm230 = vcmp.lt.s32.totalorder %v229, 2
    %vm231 = vcmp.eq.s32.totalorder %v229, 0
    %v232 = vxor.u32 %v227, 2147483648
    %v233 = vsel %vm231, %v226, %v232
    %vm234 = vcmp.eq.s32.totalorder %v229, 2
    %v235 = vxor.u32 %v226, 2147483648
    %v236 = vsel %vm234, %v235, %v227
    %v237 = vsel %vm230, %v233, %v236
    %v238 = vsel %vm228, nan, %v237
    %v239 = vmul.f32 %v238, %v132
    %241 = vrot.lane.b32.xlu0 %v239, 16
    %v242 = vpop.permute.xlu0 %241
    %vm244 = vcmask 261248
    %245 = vst.msk [vmem:[#allocation3] sm:$0xff] %vm244, %v242
    // Predicated region
    $region10: #{tpu_custom_call.1} parent=1 // pred_check
      _
    $region11: #{tpu_custom_call.1} parent=1 // pred_check_branch
      %247 = sbr.rel (0) target = $region13
    $region12: #{tpu_custom_call.1} parent=1 // pred_region
      %s249 = ssub.s32 128, 128
      %250 = vsyncadd [#allocation4], %s249
      %s252 = sshll.u32 [#allocation3], 4
      %s253 = int_to_ptr.vmem [resolvable:$true] %s252
      %255 = dma.vmem_to_hbm [thread:$0]  %s253, 128, %s2, [#allocation4]
    $region13: #{tpu_custom_call.1} parent=1 // pred_fallthru
      _
    // Predicated region
    $region14: #{tpu_custom_call.1} parent=1 // pred_check
      _
    $region15: #{tpu_custom_call.1} parent=1 // pred_check_branch
      %257 = sbr.rel (0) target = $region17
    $region16: #{tpu_custom_call.1} parent=1 // pred_region
      %258 = dma.done [#allocation4], 128
    $region17: #{tpu_custom_call.1} parent=1 // pred_fallthru
      _
    %259 = vsyncpa [#allocation4], 1

</llo_original>
